<compile_context>
chip_gen: v5e
topology: v5e:2x2
jax: 0.10.0
libtpu: 0.0.40
codegen_flags: <defaults>
</compile_context>

<pallas_src>
import functools

import jax
import jax.numpy as jnp
from jax import lax
from jax.experimental import pallas as pl
from jax.experimental.pallas import tpu as pltpu

_CHUNK = 512  # inner sub-tile (rows) processed per fori_loop step


def _round_up(v, m):
    return ((v + m - 1) // m) * m


def _apply_activation(v, activation):
    if activation == "relu":
        return jnp.maximum(v, 0.0)
    if activation == "elu":
        return jnp.where(v > 0.0, v, jnp.expm1(v))
    if activation == "tanh":
        return jnp.tanh(v)
    raise ValueError(f"unsupported activation: {activation}")


def _mlp_kernel(x_ref, w1_ref, b1_ref, w2_ref, b2_ref, w3_ref, b3_ref, o_ref,
                *, chunk, activation):
    """One batch tile of the fused MLP forward.

    x_ref : (tb, D)        activations tile (compute dtype)
    w1_ref: (D, H1)        fc1 weight, pre-transposed to (in, out)
    b1_ref: (1, H1)        f32
    w2_ref: (H1, H2)       fc2 weight, pre-transposed to (in, out)
    b2_ref: (1, H2)        f32
    w3_ref: (1, H2)        fc3 weight row (f32)
    b3_ref: (1, 1)         f32 scalar in SMEM
    o_ref : (1, 1, tb)     compact output; batch along the lane axis
    """
    tb = x_ref.shape[0]
    n_chunks = tb // chunk

    # Resident weights/biases: read once per grid step, reused by every chunk.
    w1 = w1_ref[...]
    b1 = b1_ref[...]
    w2 = w2_ref[...]
    b2 = b2_ref[...]
    w3 = w3_ref[...]
    b3 = b3_ref[0, 0]

    def fwd_rows(xc):
        # fc1 + activation (canonical (m,k)x(k,n) MXU matmul, f32 accumulation)
        h1 = jnp.dot(xc, w1, preferred_element_type=jnp.float32) + b1
        h1 = _apply_activation(h1, activation)
        # TODO(synk): nn.Dropout is stochastic in train mode; eval-mode identity here.
        # fc2 + activation
        h2 = jnp.dot(h1.astype(w2.dtype), w2, preferred_element_type=jnp.float32) + b2
        h2 = _apply_activation(h2, activation)
        # fc3 (out_features=1): contract H2 of w3 (1,H2) with H2 of h2 (rows,H2)
        # -> (1, rows): batch lands on the lane axis => compact lane-dense output.
        return lax.dot_general(
            w3, h2, (((1,), (1,)), ((), ())),
            preferred_element_type=jnp.float32) + b3

    if n_chunks == 1:
        o_ref[0] = fwd_rows(x_ref[...]).astype(o_ref.dtype)
    else:
        # Big outer tile amortizes per-step overhead; small inner chunk keeps the
        # (chunk, H) intermediates inside the vreg budget (no multi-MiB spills).
        def body(c, carry):
            r0 = pl.multiple_of(c * chunk, chunk)
            oc = fwd_rows(x_ref[pl.ds(r0, chunk), :])
            o_ref[0, :, pl.ds(r0, chunk)] = oc.astype(o_ref.dtype)
            return carry

        lax.fori_loop(0, n_chunks, body, 0, unroll=2)


def just_values_forward(x, params, adjacency_matrix=None, *,
                        batch_tile=8192, compute_dtype=jnp.float32,
                        activation="relu"):
    """Fused JustValuesOnNodes forward via a batch-tiled Pallas kernel.

    params: dict with 'w1' (H1,D), 'b1' (H1,), 'w2' (H2,H1), 'b2' (H2,),
            'w3' (1,H2), 'b3' (1,)  -- PyTorch nn.Linear layout.  Weights are
            transposed once here (tiny, one-time) so the kernel runs canonical
            (m,k)x(k,n) matmuls.
    adjacency_matrix is ignored, exactly as in the PyTorch module's forward.
    compute_dtype: jnp.float32 (default) or jnp.bfloat16 for the matmul
            operands (f32 accumulation always); pass bf16 x to avoid a cast pass.
    """
    del adjacency_matrix  # unused, per reference module
    B, D = x.shape
    H1 = params["w1"].shape[0]
    H2 = params["w2"].shape[0]

    # ---- batch tiling -------------------------------------------------------
    tb = max(8, min(int(batch_tile), _round_up(B, 8)))
    if tb >= _CHUNK:
        chunk = _CHUNK
        tb = _round_up(tb, _CHUNK)   # multiple of 128 -> unmasked lane-dense stores
    else:
        tb = _round_up(tb, 8)        # small-batch path (single chunk)
        chunk = tb
    b_pad = _round_up(B, tb)

    if b_pad != B:
        # NOTE: jnp.pad rewrites all of x; for large ragged B pick a batch_tile
        # that divides B (or a smaller tile) so this copy is absent/negligible.
        x = jnp.pad(x, ((0, b_pad - B), (0, 0)))
    if x.dtype != compute_dtype:
        # Only cast when needed (a standalone astype pass costs more than it saves).
        x = x.astype(compute_dtype)

    # ---- params: one-time transposes to (in, out) layout --------------------
    w1t = jnp.asarray(params["w1"]).T.astype(compute_dtype)     # (D, H1)
    w2t = jnp.asarray(params["w2"]).T.astype(compute_dtype)     # (H1, H2)
    w3 = jnp.asarray(params["w3"]).reshape(1, H2).astype(jnp.float32)
    b1 = jnp.asarray(params["b1"]).reshape(1, H1).astype(jnp.float32)
    b2 = jnp.asarray(params["b2"]).reshape(1, H2).astype(jnp.float32)
    b3 = jnp.asarray(params["b3"]).reshape(1, 1).astype(jnp.float32)

    n_tiles = b_pad // tb
    kernel = functools.partial(_mlp_kernel, chunk=chunk, activation=activation)

    def resident(shape):
        # Whole array as one block with a constant block index: fetched once,
        # resident in VMEM across the entire batch loop.
        return pl.BlockSpec(shape, lambda i: (0, 0))

    out = pl.pallas_call(
        kernel,
        out_shape=jax.ShapeDtypeStruct((n_tiles, 1, tb), jnp.float32),
        grid=(n_tiles,),
        in_specs=[
            pl.BlockSpec((tb, D), lambda i: (i, 0)),    # x: tiled over batch
            resident((D, H1)),                           # w1^T
            resident((1, H1)),                           # b1
            resident((H1, H2)),                          # w2^T
            resident((1, H2)),                           # b2
            resident((1, H2)),                           # w3 row
            pl.BlockSpec((1, 1), lambda i: (0, 0),
                         memory_space=pltpu.SMEM),       # b3 scalar
        ],
        out_specs=pl.BlockSpec((1, 1, tb), lambda i: (i, 0, 0)),
        compiler_params=pltpu.CompilerParams(
            dimension_semantics=("parallel",)),          # shards tiles across TCs on v7x
    )(x, w1t, b1, w2t, b2, w3, b3)

    # Compact output: (n_tiles, 1, tb) -> (b_pad,) -> (B, 1). Cheap (4 B/row).
    return out.reshape(b_pad)[:B].reshape(B, 1)


def init_params(key, data_size, layer_1, layer_2):
    """Deterministic synthetic parameter init (PyTorch nn.Linear shapes)."""
    ks = jax.random.split(key, 6)
    scale = 0.1
    return {
        "w1": scale * jax.random.normal(ks[0], (layer_1, data_size), jnp.float32),
        "b1": scale * jax.random.normal(ks[1], (layer_1,), jnp.float32),
        "w2": scale * jax.random.normal(ks[2], (layer_2, layer_1), jnp.float32),
        "b2": scale * jax.random.normal(ks[3], (layer_2,), jnp.float32),
        "w3": scale * jax.random.normal(ks[4], (1, layer_2), jnp.float32),
        "b3": scale * jax.random.normal(ks[5], (1,), jnp.float32),
    }


if __name__ == "__main__":
    # RECEIVED_PARAMS analogue: layer_1=32, layer_2=32, activation='relu', dropout=0.0
    batch, data_size, layer_1, layer_2 = 2, 16, 32, 32

    key = jax.random.PRNGKey(0)
    kx, ka, kp = jax.random.split(key, 3)
    x = jax.random.normal(kx, (batch, data_size), jnp.float32)
    adjacency_matrix = jax.random.normal(
        ka, (batch, data_size, data_size), jnp.float32)  # unused by forward
    params = init_params(kp, data_size, layer_1, layer_2)

    out = just_values_forward(x, params, adjacency_matrix)
    out = jax.block_until_ready(out)

    # Pure-JAX reference check (f32 compute path -> tight tolerance is fine).
    h1 = jnp.maximum(x @ params["w1"].T + params["b1"], 0.0)
    h2 = jnp.maximum(h1 @ params["w2"].T + params["b2"], 0.0)
    ref = h2 @ params["w3"].T + params["b3"]
    assert out.shape == (batch, 1)
    assert jnp.allclose(out, ref, atol=1e-5, rtol=1e-5)

    print("KERNEL_OK")
</pallas_src>

<mosaic_0001>
module attributes {stable_mosaic.version = 11 : i64} {
  func.func @_mlp_kernel(%arg0: i32, %arg1: memref<8x16xf32, #tpu.memory_space<vmem>>, %arg2: memref<16x32xf32, #tpu.memory_space<vmem>>, %arg3: memref<1x32xf32, #tpu.memory_space<vmem>>, %arg4: memref<32x32xf32, #tpu.memory_space<vmem>>, %arg5: memref<1x32xf32, #tpu.memory_space<vmem>>, %arg6: memref<1x32xf32, #tpu.memory_space<vmem>>, %arg7: memref<1x1xf32, #tpu.memory_space<smem>>, %arg8: memref<1x1x8xf32, #tpu.memory_space<vmem>>) attributes {dimension_semantics = [#tpu.dimension_semantics<parallel>], iteration_bounds = array<i64: 1>, scalar_prefetch = 0 : i64, scratch_operands = 0 : i64, tpu.core_type = #tpu.core_type<tc>, window_params = [{transform_indices = @transform_0, window_bounds = array<i64: 8, 16>}, {pipeline_mode = #tpu.pipeline_mode<synchronous>, transform_indices = @transform_1, window_bounds = array<i64: 16, 32>}, {pipeline_mode = #tpu.pipeline_mode<synchronous>, transform_indices = @transform_2, window_bounds = array<i64: 1, 32>}, {pipeline_mode = #tpu.pipeline_mode<synchronous>, transform_indices = @transform_3, window_bounds = array<i64: 32, 32>}, {pipeline_mode = #tpu.pipeline_mode<synchronous>, transform_indices = @transform_4, window_bounds = array<i64: 1, 32>}, {pipeline_mode = #tpu.pipeline_mode<synchronous>, transform_indices = @transform_5, window_bounds = array<i64: 1, 32>}, {transform_indices = @transform_6, window_bounds = array<i64: 1, 1>}, {transform_indices = @transform_7, window_bounds = array<i64: 1, 1, 8>}]} {
    %c0 = arith.constant 0 : index
    %c0_0 = arith.constant 0 : index
    %0 = vector.load %arg2[%c0, %c0_0] : memref<16x32xf32, #tpu.memory_space<vmem>>, vector<16x32xf32>
    %c0_1 = arith.constant 0 : index
    %c0_2 = arith.constant 0 : index
    %1 = vector.load %arg3[%c0_1, %c0_2] : memref<1x32xf32, #tpu.memory_space<vmem>>, vector<1x32xf32>
    %c0_3 = arith.constant 0 : index
    %c0_4 = arith.constant 0 : index
    %2 = vector.load %arg4[%c0_3, %c0_4] : memref<32x32xf32, #tpu.memory_space<vmem>>, vector<32x32xf32>
    %c0_5 = arith.constant 0 : index
    %c0_6 = arith.constant 0 : index
    %3 = vector.load %arg5[%c0_5, %c0_6] : memref<1x32xf32, #tpu.memory_space<vmem>>, vector<1x32xf32>
    %c0_7 = arith.constant 0 : index
    %c0_8 = arith.constant 0 : index
    %4 = vector.load %arg6[%c0_7, %c0_8] : memref<1x32xf32, #tpu.memory_space<vmem>>, vector<1x32xf32>
    %c0_9 = arith.constant 0 : index
    %c0_10 = arith.constant 0 : index
    %5 = memref.load %arg7[%c0_9, %c0_10] : memref<1x1xf32, #tpu.memory_space<smem>>
    %c0_11 = arith.constant 0 : index
    %c0_12 = arith.constant 0 : index
    %6 = vector.load %arg1[%c0_11, %c0_12] : memref<8x16xf32, #tpu.memory_space<vmem>>, vector<8x16xf32>
    %cst = arith.constant dense<0.000000e+00> : vector<8x32xf32>
    %7 = tpu.matmul %6, %0, %cst {dimension_numbers = #tpu.dot_dimension_numbers<[1], [0], [0], [1], [0, 0, 1, 1], [], []>} : vector<8x16xf32>, vector<16x32xf32>, vector<8x32xf32> -> vector<8x32xf32>
    %8 = vector.broadcast %1 : vector<1x32xf32> to vector<8x32xf32>
    %9 = arith.addf %7, %8 : vector<8x32xf32>
    %cst_13 = arith.constant 0.000000e+00 : f32
    %10 = vector.broadcast %cst_13 : f32 to vector<8x32xf32>
    %11 = arith.maximumf %9, %10 : vector<8x32xf32>
    %cst_14 = arith.constant dense<0.000000e+00> : vector<8x32xf32>
    %12 = tpu.matmul %11, %2, %cst_14 {dimension_numbers = #tpu.dot_dimension_numbers<[1], [0], [0], [1], [0, 0, 1, 1], [], []>} : vector<8x32xf32>, vector<32x32xf32>, vector<8x32xf32> -> vector<8x32xf32>
    %13 = vector.broadcast %3 : vector<1x32xf32> to vector<8x32xf32>
    %14 = arith.addf %12, %13 : vector<8x32xf32>
    %cst_15 = arith.constant 0.000000e+00 : f32
    %15 = vector.broadcast %cst_15 : f32 to vector<8x32xf32>
    %16 = arith.maximumf %14, %15 : vector<8x32xf32>
    %cst_16 = arith.constant dense<0.000000e+00> : vector<1x8xf32>
    %17 = tpu.matmul %4, %16, %cst_16 {dimension_numbers = #tpu.dot_dimension_numbers<[1], [1], [0], [0], [0, 0, 1, 0], [], []>} : vector<1x32xf32>, vector<8x32xf32>, vector<1x8xf32> -> vector<1x8xf32>
    %18 = vector.broadcast %5 : f32 to vector<1x8xf32>
    %19 = arith.addf %17, %18 : vector<1x8xf32>
    %c0_17 = arith.constant 0 : index
    %c0_18 = arith.constant 0 : index
    %c0_19 = arith.constant 0 : index
    %20 = vector.load %arg8[%c0_17, %c0_18, %c0_19] : memref<1x1x8xf32, #tpu.memory_space<vmem>>, vector<1x1x8xf32>
    %21 = vector.shape_cast %20 : vector<1x1x8xf32> to vector<1x8xf32>
    %22 = vector.shape_cast %19 : vector<1x8xf32> to vector<1x1x8xf32>
    tpu.vector_store %arg8[%c0_17, %c0_18, %c0_19], %22 {strides = array<i32>} : memref<1x1x8xf32, #tpu.memory_space<vmem>>, vector<1x1x8xf32>,
    return
  }
  func.func @transform_0(%arg0: i32) -> (i32, i32) {
    %c0_i32 = arith.constant 0 : i32
    %c0_i32_0 = arith.constant 0 : i32
    return %arg0, %c0_i32 : i32, i32
  }
  func.func @transform_1(%arg0: i32) -> (i32, i32) {
    %c0_i32 = arith.constant 0 : i32
    %c0_i32_0 = arith.constant 0 : i32
    %c0_i32_1 = arith.constant 0 : i32
    return %c0_i32, %c0_i32_0 : i32, i32
  }
  func.func @transform_2(%arg0: i32) -> (i32, i32) {
    %c0_i32 = arith.constant 0 : i32
    %c0_i32_0 = arith.constant 0 : i32
    %c0_i32_1 = arith.constant 0 : i32
    return %c0_i32, %c0_i32_0 : i32, i32
  }
  func.func @transform_3(%arg0: i32) -> (i32, i32) {
    %c0_i32 = arith.constant 0 : i32
    %c0_i32_0 = arith.constant 0 : i32
    %c0_i32_1 = arith.constant 0 : i32
    return %c0_i32, %c0_i32_0 : i32, i32
  }
  func.func @transform_4(%arg0: i32) -> (i32, i32) {
    %c0_i32 = arith.constant 0 : i32
    %c0_i32_0 = arith.constant 0 : i32
    %c0_i32_1 = arith.constant 0 : i32
    return %c0_i32, %c0_i32_0 : i32, i32
  }
  func.func @transform_5(%arg0: i32) -> (i32, i32) {
    %c0_i32 = arith.constant 0 : i32
    %c0_i32_0 = arith.constant 0 : i32
    %c0_i32_1 = arith.constant 0 : i32
    return %c0_i32, %c0_i32_0 : i32, i32
  }
  func.func @transform_6(%arg0: i32) -> (i32, i32) {
    %c0_i32 = arith.constant 0 : i32
    %c0_i32_0 = arith.constant 0 : i32
    %c0_i32_1 = arith.constant 0 : i32
    return %c0_i32, %c0_i32_0 : i32, i32
  }
  func.func @transform_7(%arg0: i32) -> (i32, i32, i32) {
    %c0_i32 = arith.constant 0 : i32
    %c0_i32_0 = arith.constant 0 : i32
    %c0_i32_1 = arith.constant 0 : i32
    return %arg0, %c0_i32, %c0_i32_0 : i32, i32, i32
  }
}

</mosaic_0001>

<llo_original>
// kernel: tpu_custom_call.1
$region0: #{tpu_custom_call.1}
  #allocation0 [shape = 'u32[]', space=smem, size = 0x4, offset = 0x4, fixed_abs, tag = 'smem constant byte address 0x4 - core index']
  #allocation1 [shape = 'u32[72,128]{1,0:T(1,128)}', space=vmem, size = 0x9000, scoped, tag = 'internal scratch']
  #allocation2 [shape = 'f32[1,1]{1,0:T(1,128)S(6)}', space=smem, size = 0x200, scoped, tag = 'scoped memory for tpu_custom_call.1']
  %s0 = inlined_call_operand.hbm [shape: f32[8,16], index: 0, kind: input, shape index: {}]
  %s1 = inlined_call_operand.hbm [shape: f32[16,32], index: 1, kind: input, shape index: {}]
  %s2 = inlined_call_operand.vmem [shape: f32[1,32], index: 2, kind: input, shape index: {}]
  %s3 = inlined_call_operand.hbm [shape: f32[32,32], index: 3, kind: input, shape index: {}]
  %s4 = inlined_call_operand.vmem [shape: f32[1,32], index: 4, kind: input, shape index: {}]
  %s5 = inlined_call_operand.vmem [shape: f32[1,32], index: 5, kind: input, shape index: {}]
  %s6 = inlined_call_operand.<no memory space> [shape: f32[1,1], index: 6, kind: input, shape index: {}]
  %s7 = inlined_call_operand.hbm [shape: f32[1,1,8], index: 7, kind: output, shape index: {}]
  %s8 = sld [smem:[#allocation0]]
  $region50: #{tpu_custom_call.1} parent=0
    _
  %s10 = ssub.s32 1, %s8
  %s11 = scalar_select 0, %s10, %s8
  %12 = sst [smem:[#allocation2]] %s6
  $region1: #{tpu_custom_call.1} parent=0
    #allocation3 [shape = 'u8[4096]{0}', space=vmem, size = 0x1000, scoped, tag = 'input window, operand 0, single buffered']
    #allocation4 [shape = 's32[1]{0}', space=sflag, size = 0x4, scoped, tag = 'scoped memory for tpu_custom_call.1']
    #allocation5 [shape = 's32[1]{0}', space=sflag, size = 0x4, scoped, tag = 'scoped memory for tpu_custom_call.1']
    #allocation6 [shape = 'u8[8192]{0}', space=vmem, size = 0x2000, scoped, tag = 'input window, operand 1, single buffered']
    #allocation7 [shape = 's32[1]{0}', space=sflag, size = 0x4, scoped, tag = 'scoped memory for tpu_custom_call.1']
    #allocation8 [shape = 'u8[16384]{0}', space=vmem, size = 0x4000, scoped, tag = 'input window, operand 3, single buffered']
    #allocation9 [shape = 'u8[512]{0}', space=vmem, size = 0x400, scoped, tag = 'output window, operand 0, single buffered']
    %13 = vsyncpa [#allocation4], 0
    %14 = vsyncpa [#allocation7], 0
    %15 = vsyncpa [#allocation5], 0
    // Predicated region
    $region2: #{tpu_custom_call.1} parent=1 // pred_check
      _
    $region3: #{tpu_custom_call.1} parent=1 // pred_check_branch
      %17 = sbr.rel (0) target = $region5
    $region4: #{tpu_custom_call.1} parent=1 // pred_region
      %19 = vsyncadd [#allocation4], 0
      %s21 = sshll.u32 %s0, 4
      %s22 = int_to_ptr.hbm [resolvable:$true] %s21
      %s23 = sshll.u32 [#allocation3], 4
      %s24 = int_to_ptr.vmem [resolvable:$true] %s23
      %26 = dma.hbm_to_vmem [thread:$0]  %s22, 128, %s24, [#allocation4]
    $region5: #{tpu_custom_call.1} parent=1 // pred_fallthru
      _
    // Predicated region
    $region6: #{tpu_custom_call.1} parent=1 // pred_check
      _
    $region7: #{tpu_custom_call.1} parent=1 // pred_check_branch
      %28 = sbr.rel (0) target = $region9
    $region8: #{tpu_custom_call.1} parent=1 // pred_region
      %30 = vsyncadd [#allocation7], 0
      %s31 = sshll.u32 %s1, 4
      %s32 = int_to_ptr.hbm [resolvable:$true] %s31
      %s33 = sshll.u32 [#allocation6], 4
      %s34 = int_to_ptr.vmem [resolvable:$true] %s33
      %39 = dma.hbm_to_vmem [thread:$0]  %s32, 256, %s34, [#allocation7], 128, 128, 8
    $region9: #{tpu_custom_call.1} parent=1 // pred_fallthru
      _
    // Predicated region
    $region10: #{tpu_custom_call.1} parent=1 // pred_check
      _
    $region11: #{tpu_custom_call.1} parent=1 // pred_check_branch
      %41 = sbr.rel (0) target = $region13
    $region12: #{tpu_custom_call.1} parent=1 // pred_region
      _
    $region13: #{tpu_custom_call.1} parent=1 // pred_fallthru
      _
    // Predicated region
    $region14: #{tpu_custom_call.1} parent=1 // pred_check
      _
    $region15: #{tpu_custom_call.1} parent=1 // pred_check_branch
      %43 = sbr.rel (0) target = $region17
    $region16: #{tpu_custom_call.1} parent=1 // pred_region
      %45 = vsyncadd [#allocation7], 0
      %s46 = sshll.u32 %s3, 4
      %s47 = int_to_ptr.hbm [resolvable:$true] %s46
      %s48 = sshll.u32 [#allocation8], 4
      %s49 = int_to_ptr.vmem [resolvable:$true] %s48
      %54 = dma.hbm_to_vmem [thread:$0]  %s47, 512, %s49, [#allocation7], 128, 128, 8
    $region17: #{tpu_custom_call.1} parent=1 // pred_fallthru
      _
    // Predicated region
    $region18: #{tpu_custom_call.1} parent=1 // pred_check
      _
    $region19: #{tpu_custom_call.1} parent=1 // pred_check_branch
      %56 = sbr.rel (0) target = $region21
    $region20: #{tpu_custom_call.1} parent=1 // pred_region
      _
    $region21: #{tpu_custom_call.1} parent=1 // pred_fallthru
      _
    // Predicated region
    $region22: #{tpu_custom_call.1} parent=1 // pred_check
      _
    $region23: #{tpu_custom_call.1} parent=1 // pred_check_branch
      %58 = sbr.rel (0) target = $region25
    $region24: #{tpu_custom_call.1} parent=1 // pred_region
      _
    $region25: #{tpu_custom_call.1} parent=1 // pred_fallthru
      _
    // Predicated region
    $region26: #{tpu_custom_call.1} parent=1 // pred_check
      _
    $region27: #{tpu_custom_call.1} parent=1 // pred_check_branch
      %60 = sbr.rel (0) target = $region29
    $region28: #{tpu_custom_call.1} parent=1 // pred_region
      _
    $region29: #{tpu_custom_call.1} parent=1 // pred_fallthru
      _
    // Predicated region
    $region30: #{tpu_custom_call.1} parent=1 // pred_check
      _
    $region31: #{tpu_custom_call.1} parent=1 // pred_check_branch
      %62 = sbr.rel (0) target = $region33
    $region32: #{tpu_custom_call.1} parent=1 // pred_region
      %64 = dma.done [#allocation4], 128
    $region33: #{tpu_custom_call.1} parent=1 // pred_fallthru
      _
    // Predicated region
    $region34: #{tpu_custom_call.1} parent=1 // pred_check
      _
    $region35: #{tpu_custom_call.1} parent=1 // pred_check_branch
      %66 = sbr.rel (0) target = $region37
    $region36: #{tpu_custom_call.1} parent=1 // pred_region
      %68 = dma.done [#allocation7], 256
    $region37: #{tpu_custom_call.1} parent=1 // pred_fallthru
      _
    // Predicated region
    $region38: #{tpu_custom_call.1} parent=1 // pred_check
      _
    $region39: #{tpu_custom_call.1} parent=1 // pred_check_branch
      %70 = sbr.rel (0) target = $region41
    $region40: #{tpu_custom_call.1} parent=1 // pred_region
      %72 = dma.done [#allocation7], 512
    $region41: #{tpu_custom_call.1} parent=1 // pred_fallthru
      _
    %v73 = vld [vmem:[#allocation6] sm:$0xff]
    %v74 = vld [vmem:[#allocation6 + $0x8] sm:$0xff]
    %v75 = vld [vmem:[%s2] sm:$0x1]
    %v76 = vld [vmem:[#allocation8] sm:$0xff]
    %v77 = vld [vmem:[#allocation8 + $0x8] sm:$0xff]
    %v78 = vld [vmem:[#allocation8 + $0x10] sm:$0xff]
    %v79 = vld [vmem:[#allocation8 + $0x18] sm:$0xff]
    %v80 = vld [vmem:[%s4] sm:$0x1]
    %v81 = vld [vmem:[%s5] sm:$0x1]
    %s82 = sld [smem:[#allocation2]]
    %v83 = vld [vmem:[#allocation3] sm:$0xff]
    %v85 = vperm.slane %v75, 0
    %vm87 = vcmask 130048
    %v89 = vsel %vm87, %v83, 0
    %91 = vmatpush.msra.mxu0 0.0
    %92 = vmatpush.msra.mxu0 0.0
    %93 = vmatpush.msra.mxu0 0.0
    %94 = vmatpush.msra.mxu0 0.0
    %95 = vmatpush.msra.mxu0 0.0
    %96 = vmatpush.msra.mxu0 0.0
    %97 = vmatpush.msra.mxu0 0.0
    %98 = vmatpush.msra.mxu0 0.0
    %99 = vmatpush.msra.mxu0 0.0
    %100 = vmatpush.msra.mxu0 0.0
    %101 = vmatpush.msra.mxu0 0.0
    %102 = vmatpush.msra.mxu0 0.0
    %103 = vmatpush.msra.mxu0 0.0
    %104 = vmatpush.msra.mxu0 0.0
    %105 = vmatpush.msra.mxu0 %v74
    %106 = vmatpush.msra.mxu0 %v73
    %107 = vmatmul.f32.gmra.mxu0 %v89
    %v108 = vpop.f32.mrf.mxu0
    %v109 = vadd.f32 %v85, %v108
    %110 = vdwg.mxu0
    %v111 = vmax.f32 %v109, 0.0
    %v113 = vperm.slane %v80, 0
    %vm115 = vcmask 261120
    %v117 = vsel %vm115, %v111, 0
    %119 = vmatpush.msra.mxu0 0.0
    %120 = vmatpush.msra.mxu0 0.0
    %121 = vmatpush.msra.mxu0 0.0
    %122 = vmatpush.msra.mxu0 0.0
    %123 = vmatpush.msra.mxu0 0.0
    %124 = vmatpush.msra.mxu0 0.0
    %125 = vmatpush.msra.mxu0 0.0
    %126 = vmatpush.msra.mxu0 0.0
    %127 = vmatpush.msra.mxu0 0.0
    %128 = vmatpush.msra.mxu0 0.0
    %129 = vmatpush.msra.mxu0 0.0
    %130 = vmatpush.msra.mxu0 0.0
    %131 = vmatpush.msra.mxu0 %v79
    %132 = vmatpush.msra.mxu0 %v78
    %133 = vmatpush.msra.mxu0 %v77
    %134 = vmatpush.msra.mxu0 %v76
    %135 = vmatmul.f32.gmra.mxu0 %v117
    %v136 = vpop.f32.mrf.mxu0
    %v137 = vadd.f32 %v113, %v136
    %138 = vdwg.mxu0
    %v139 = vmax.f32 %v137, 0.0
    %v140 = vstv %s82
    %v142 = vsel %vm115, %v81, 0
    %v145 = vsel %vm115, %v139, 0
    %147 = vmatpush.xpose.msra.mxu0 0.0
    %148 = vmatpush.xpose.msra.mxu0 0.0
    %149 = vmatpush.xpose.msra.mxu0 0.0
    %150 = vmatpush.xpose.msra.mxu0 0.0
    %151 = vmatpush.xpose.msra.mxu0 0.0
    %152 = vmatpush.xpose.msra.mxu0 0.0
    %153 = vmatpush.xpose.msra.mxu0 0.0
    %154 = vmatpush.xpose.msra.mxu0 0.0
    %155 = vmatpush.xpose.msra.mxu0 0.0
    %156 = vmatpush.xpose.msra.mxu0 0.0
    %157 = vmatpush.xpose.msra.mxu0 0.0
    %158 = vmatpush.xpose.msra.mxu0 0.0
    %159 = vmatpush.xpose.msra.mxu0 0.0
    %160 = vmatpush.xpose.msra.mxu0 0.0
    %161 = vmatpush.xpose.msra.mxu0 0.0
    %162 = vmatpush.xpose.msra.mxu0 %v145
    %163 = vmatmul.f32.gmra.mxu0 %v142
    %v164 = vpop.f32.mrf.mxu0
    %v165 = vadd.f32 %v140, %v164
    %166 = vdwg.mxu0
    %vm167 = vcmask 57344
    %168 = vst.msk [vmem:[#allocation9] sm:$0x1] %vm167, %v165
    // Predicated region
    $region42: #{tpu_custom_call.1} parent=1 // pred_check
      _
    $region43: #{tpu_custom_call.1} parent=1 // pred_check_branch
      %170 = sbr.rel (0) target = $region45
    $region44: #{tpu_custom_call.1} parent=1 // pred_region
      %172 = vsyncadd [#allocation5], 0
      %s174 = sshll.u32 [#allocation9], 4
      %s175 = int_to_ptr.vmem [resolvable:$true] %s174
      %s176 = sshll.u32 %s7, 4
      %s177 = int_to_ptr.hbm [resolvable:$true] %s176
      %179 = dma.vmem_to_hbm [thread:$0]  %s175, 16, %s177, [#allocation5]
    $region45: #{tpu_custom_call.1} parent=1 // pred_fallthru
      _
    // Predicated region
    $region46: #{tpu_custom_call.1} parent=1 // pred_check
      _
    $region47: #{tpu_custom_call.1} parent=1 // pred_check_branch
      %181 = sbr.rel (0) target = $region49
    $region48: #{tpu_custom_call.1} parent=1 // pred_region
      %183 = dma.done [#allocation5], 16
    $region49: #{tpu_custom_call.1} parent=1 // pred_fallthru
      _
    %184 = vsyncpa [#allocation4], 1
    %185 = vsyncpa [#allocation7], 1
    %186 = vsyncpa [#allocation5], 1

</llo_original>
